<compile_context>
chip_gen: v6e
topology: v6e:2x2x1
jax: 0.10.0
libtpu: 0.0.40
codegen_flags: <defaults>
</compile_context>

<pallas_src>
import functools

import jax
import jax.numpy as jnp
from jax.experimental import pallas as pl
from jax.experimental.pallas import tpu as pltpu

DQ = 32  # w_qs / w_ks output channels (hard-coded to 32 in the torch module)


def _round_up(x, m):
    return ((x + m - 1) // m) * m


def _pick_chunk(total, target=1024):
    """Largest chunk <= target that divides `total` and keeps blocks (8,128)-legal."""
    if total <= target:
        return total
    for t in range(target, 7, -1):
        if total % t == 0 and t % 8 == 0:
            return t
    return total


# -----------------------------------------------------------------------------
# Streaming GEMM (all 1x1 convolutions): weight resident in VMEM, grid over M.
# -----------------------------------------------------------------------------


def _mm_kernel(a_ref, b_ref, o_ref):
    o_ref[...] = jnp.dot(a_ref[...], b_ref[...],
                         preferred_element_type=jnp.float32).astype(o_ref.dtype)


def pallas_matmul(a, b, out_dtype=jnp.bfloat16, tm=1024):
    """(M, K) @ (K, N): bf16 MXU inputs, weight fully resident, single M grid axis."""
    M, K = a.shape
    K2, N = b.shape
    assert K == K2
    if a.dtype != jnp.bfloat16:
        a = a.astype(jnp.bfloat16)
    if b.dtype != jnp.bfloat16:
        b = b.astype(jnp.bfloat16)
    tm = min(tm, _round_up(M, 8))
    return pl.pallas_call(
        _mm_kernel,
        out_shape=jax.ShapeDtypeStruct((M, N), out_dtype),
        grid=(pl.cdiv(M, tm),),
        in_specs=[
            pl.BlockSpec((tm, K), lambda i: (i, 0)),
            pl.BlockSpec((K, N), lambda i: (0, 0)),
        ],
        out_specs=pl.BlockSpec((tm, N), lambda i: (i, 0)),
        compiler_params=pltpu.CompilerParams(dimension_semantics=("parallel",)),
    )(a, b)


def conv1x1(x, w_mat, padding=0, out_dtype=jnp.bfloat16):
    """x: NHWC bf16; w_mat: (Cin, Cout) bf16; bias-free 1x1 conv."""
    if padding:
        x = jnp.pad(x, ((0, 0), (padding, padding), (padding, padding), (0, 0)))
    N, H, W, C = x.shape
    Cout = w_mat.shape[1]
    y = pallas_matmul(x.reshape(N * H * W, C), w_mat, out_dtype=out_dtype)
    return y.reshape(N, H, W, Cout)


# -----------------------------------------------------------------------------
# Row-tiled fused 3x3 convolution (halo rows via a second BlockSpec, no im2col HBM)
# -----------------------------------------------------------------------------


def _conv3x3_kernel(xm_ref, xh_ref, w_ref, o_ref):
    # xm_ref: (1, TH*W, C)  main rows of the height-padded image (row-flattened, bf16)
    # xh_ref: (1, 2*W,  C)  the two halo rows directly below the main rows
    # w_ref : (9*C, Cout)   taps in (kh, kw, cin) order (bf16)
    # o_ref : (1, TH*W, Cout)
    C = xm_ref.shape[2]
    W = xh_ref.shape[1] // 2
    THW = xm_ref.shape[1]
    Cout = o_ref.shape[2]

    guard = jnp.zeros((1, C), xm_ref.dtype)
    flat = jnp.concatenate([guard, xm_ref[0], xh_ref[0], guard], axis=0)

    col = jax.lax.broadcasted_iota(jnp.int32, (THW, 1), 0) % W
    left, right = col == 0, col == W - 1

    taps = []
    for kh in range(3):
        for kw in range(3):
            patch = flat[kh * W + kw: kh * W + kw + THW, :]
            # width-boundary taps wrap to the neighbouring image row -> zero the
            # bf16 operand (cheaper than masking the f32 result)
            if kw == 0:
                patch = jnp.where(left, 0.0, patch)
            elif kw == 2:
                patch = jnp.where(right, 0.0, patch)
            taps.append(patch)

    if C % 128 == 0:
        # lane-aligned: one MXU matmul of contraction depth 9*C
        lhs = jnp.concatenate(taps, axis=-1)                       # (TH*W, 9*C)
        acc = jnp.dot(lhs, w_ref[...], preferred_element_type=jnp.float32)
    else:
        acc = jnp.zeros((THW, Cout), jnp.float32)
        for i, patch in enumerate(taps):
            acc = acc + jnp.dot(patch, w_ref[i * C:(i + 1) * C, :],
                                preferred_element_type=jnp.float32)
    o_ref[0] = acc.astype(o_ref.dtype)


def _pick_rows(H, W, C, max_rows=8, max_lhs_bytes=4 * 1024 * 1024):
    for th in range(min(max_rows, H), 1, -1):
        if (H % th == 0 and th % 2 == 0 and (th * W) % 8 == 0
                and th * W * 9 * C * 2 <= max_lhs_bytes):
            return th
    return H


def conv3x3(x, w9):
    """3x3 conv, stride 1, padding 1, bias-free. x: NHWC bf16; w9: (9*Cin, Cout) bf16."""
    N, H, W, C = x.shape
    Cout = w9.shape[1]
    assert H % 2 == 0 and W % 4 == 0, "backbone-stride feature maps expected"
    xp = jnp.pad(x, ((0, 0), (1, 1), (0, 0), (0, 0))).reshape(N, (H + 2) * W, C)
    TH = _pick_rows(H, W, C)
    R = H // TH
    out = pl.pallas_call(
        _conv3x3_kernel,
        out_shape=jax.ShapeDtypeStruct((N, H * W, Cout), jnp.bfloat16),
        grid=(N, R),
        in_specs=[
            pl.BlockSpec((1, TH * W, C), lambda n, r: (n, r, 0)),
            pl.BlockSpec((1, 2 * W, C), lambda n, r: (n, (r + 1) * (TH // 2), 0)),
            pl.BlockSpec((9 * C, Cout), lambda n, r: (0, 0)),
        ],
        out_specs=pl.BlockSpec((1, TH * W, Cout), lambda n, r: (n, r, 0)),
        compiler_params=pltpu.CompilerParams(
            dimension_semantics=("parallel", "parallel"),
            vmem_limit_bytes=48 * 1024 * 1024),
    )(xp, xp, w9)
    return out.reshape(N, H, W, Cout)


def conv3x3_weight(w):
    """(Cout, Cin, 3, 3) torch conv weight -> (9*Cin, Cout) bf16 matmul weight."""
    Cout, Cin = w.shape[0], w.shape[1]
    return jnp.transpose(w, (2, 3, 1, 0)).reshape(9 * Cin, Cout).astype(jnp.bfloat16)


# -----------------------------------------------------------------------------
# FAModule attention: f = norm(k)^T v accumulated over HW chunks, latlayer3 folded,
# then per-chunk norm(q) @ (f @ W_lat) + feat (residual fused).
# -----------------------------------------------------------------------------


def _fa_kv_kernel(k_ref, v_ref, wl_ref, f_ref, acc_ref):
    c = pl.program_id(1)

    @pl.when(c == 0)
    def _():
        acc_ref[...] = jnp.zeros_like(acc_ref)

    k = k_ref[0].astype(jnp.float32)                               # (T, Dq)
    kn = k * jax.lax.rsqrt(jnp.maximum(jnp.sum(k * k, axis=1, keepdims=True), 1e-24))
    acc_ref[...] += jax.lax.dot_general(
        kn.astype(jnp.bfloat16), v_ref[0],
        (((0,), (0,)), ((), ())), preferred_element_type=jnp.float32)   # (Dq, C)

    @pl.when(c == pl.num_programs(1) - 1)
    def _():
        f_ref[0] = jnp.dot(acc_ref[...].astype(jnp.bfloat16), wl_ref[...],
                           preferred_element_type=jnp.float32).astype(f_ref.dtype)


def _fa_qf_kernel(q_ref, fw_ref, x_ref, o_ref):
    q = q_ref[0].astype(jnp.float32)                               # (T, Dq)
    qn = q * jax.lax.rsqrt(jnp.maximum(jnp.sum(q * q, axis=1, keepdims=True), 1e-24))
    y = jnp.dot(qn.astype(jnp.bfloat16), fw_ref[0],
                preferred_element_type=jnp.float32)                # (T, C)
    o_ref[0] = (y + x_ref[0].astype(jnp.float32)).astype(o_ref.dtype)


def fa_attention(q, k, v, w_lat, feat, chunk_target=1024):
    """Returns latlayer3(q_n @ (k_n^T v)) + feat, chunked over HW."""
    N, HW, Dq = q.shape
    C = v.shape[2]
    T = _pick_chunk(HW, chunk_target)
    R = HW // T
    fw = pl.pallas_call(
        _fa_kv_kernel,
        out_shape=jax.ShapeDtypeStruct((N, Dq, C), jnp.bfloat16),
        grid=(N, R),
        in_specs=[
            pl.BlockSpec((1, T, Dq), lambda n, c: (n, c, 0)),
            pl.BlockSpec((1, T, C), lambda n, c: (n, c, 0)),
            pl.BlockSpec((C, C), lambda n, c: (0, 0)),
        ],
        out_specs=pl.BlockSpec((1, Dq, C), lambda n, c: (n, 0, 0)),
        scratch_shapes=[pltpu.VMEM((Dq, C), jnp.float32)],
        compiler_params=pltpu.CompilerParams(
            dimension_semantics=("parallel", "arbitrary")),
    )(k, v, w_lat)
    return pl.pallas_call(
        _fa_qf_kernel,
        out_shape=jax.ShapeDtypeStruct((N, HW, C), jnp.bfloat16),
        grid=(N, R),
        in_specs=[
            pl.BlockSpec((1, T, Dq), lambda n, c: (n, c, 0)),
            pl.BlockSpec((1, Dq, C), lambda n, c: (n, 0, 0)),
            pl.BlockSpec((1, T, C), lambda n, c: (n, c, 0)),
        ],
        out_specs=pl.BlockSpec((1, T, C), lambda n, c: (n, c, 0)),
        compiler_params=pltpu.CompilerParams(
            dimension_semantics=("parallel", "parallel")),
    )(q, fw, feat)


# -----------------------------------------------------------------------------
# Layer_Norm over (H, W) per (n, c): two-phase chunked sum / sum-of-squares reduction
# -----------------------------------------------------------------------------


def _ln_kernel(inv_hw, x_ref, w_ref, b_ref, o_ref, s_ref, q_ref):
    p = pl.program_id(1)
    r = pl.program_id(2)

    @pl.when(jnp.logical_and(p == 0, r == 0))
    def _():
        s_ref[...] = jnp.zeros_like(s_ref)
        q_ref[...] = jnp.zeros_like(q_ref)

    x = x_ref[0].astype(jnp.float32)                               # (T, C)

    @pl.when(p == 0)
    def _():
        s_ref[...] += jnp.sum(x, axis=0, keepdims=True)
        q_ref[...] += jnp.sum(x * x, axis=0, keepdims=True)

    @pl.when(p == 1)
    def _():
        mean = s_ref[...] * inv_hw
        var = q_ref[...] * inv_hw - mean * mean
        inv = jax.lax.rsqrt(var + 1e-5)
        o_ref[0] = ((x - mean) * inv * w_ref[...] + b_ref[...]).astype(o_ref.dtype)


def layer_norm_hw(x, weight, bias, chunk_target=2048):
    """nn.LayerNorm([H, W]) applied to an NHWC tensor (normalize over H, W per n, c)."""
    N, H, W, C = x.shape
    HW = H * W
    xf = x.reshape(N, HW, C)
    wf = weight.reshape(HW, 1).astype(jnp.float32)
    bf = bias.reshape(HW, 1).astype(jnp.float32)
    T = _pick_chunk(HW, chunk_target)
    R = HW // T
    out = pl.pallas_call(
        functools.partial(_ln_kernel, 1.0 / HW),
        out_shape=jax.ShapeDtypeStruct((N, HW, C), jnp.bfloat16),
        grid=(N, 2, R),
        in_specs=[
            pl.BlockSpec((1, T, C), lambda n, p, r: (n, r, 0)),
            pl.BlockSpec((T, 1), lambda n, p, r: (r, 0)),
            pl.BlockSpec((T, 1), lambda n, p, r: (r, 0)),
        ],
        out_specs=pl.BlockSpec((1, T, C), lambda n, p, r: (n, p * r, 0)),
        scratch_shapes=[pltpu.VMEM((1, C), jnp.float32),
                        pltpu.VMEM((1, C), jnp.float32)],
        compiler_params=pltpu.CompilerParams(
            dimension_semantics=("parallel", "arbitrary", "arbitrary")),
    )(xf, wf, bf)
    return out.reshape(N, H, W, C)


# -----------------------------------------------------------------------------
# Bilinear resize (align_corners=True, matches F.interpolate), NHWC; plain XLA.
# -----------------------------------------------------------------------------


def upsample_bilinear(x, out_h, out_w):
    N, H, W, C = x.shape
    if H == out_h and W == out_w:
        return x

    def coords(out_size, in_size):
        if out_size == 1:
            return jnp.zeros((1,), jnp.float32)
        return jnp.arange(out_size, dtype=jnp.float32) * ((in_size - 1) / (out_size - 1))

    ys, xs = coords(out_h, H), coords(out_w, W)
    y0 = jnp.floor(ys).astype(jnp.int32)
    y1 = jnp.minimum(y0 + 1, H - 1)
    wy = (ys - y0.astype(jnp.float32))[None, :, None, None]
    x0 = jnp.floor(xs).astype(jnp.int32)
    x1 = jnp.minimum(x0 + 1, W - 1)
    wx = (xs - x0.astype(jnp.float32))[None, None, :, None]

    top, bot = x[:, y0], x[:, y1]
    row = top * (1.0 - wy) + bot * wy
    left, right = row[:, :, x0], row[:, :, x1]
    return left * (1.0 - wx) + right * wx


def upsample_add(x, y):
    _, H, W, _ = y.shape
    return upsample_bilinear(x, H, W).astype(y.dtype) + y


def upsample_cat(x1, x2):
    _, H, W, _ = x2.shape
    x1 = upsample_bilinear(x1, H, W).astype(x2.dtype)
    return jnp.concatenate([x1, x2], axis=-1)


# -----------------------------------------------------------------------------
# Modules (norm_layer=None => ConvBNReLU is a bare bias-free conv)
# -----------------------------------------------------------------------------


def fa_module(p, feat, up_fea_in, up_flag, smf_flag):
    """FAModule.forward with norm_layer=None."""
    N, H, W, C = feat.shape
    feat2 = feat.reshape(N * H * W, C)

    # fused q|k 1x1 projection (feat read once for both), separate v projection
    qk = pallas_matmul(feat2, p["w_qk"])                           # (NHW, 2*DQ) bf16
    q = qk[:, :DQ].reshape(N, H * W, DQ)
    k = qk[:, DQ:].reshape(N, H * W, DQ)
    v = pallas_matmul(feat2, p["w_v"]).reshape(N, H * W, C)

    # attention + latlayer3 + residual fused: p_feat = latlayer3(q_n (k_n^T v)) + feat
    p_feat = fa_attention(q, k, v, p["w_lat"], feat.reshape(N, H * W, C))
    p_feat = p_feat.reshape(N, H, W, C)

    if up_flag and smf_flag:
        if up_fea_in is not None:
            p_feat = upsample_add(up_fea_in, p_feat)
        up_feat = conv1x1(p_feat, p["w_up"], padding=1)            # ks=1, padding=1 (torch)
        if up_fea_in is not None:
            smooth_feat = conv3x3(p_feat, p["w_smooth"])
            return up_feat, smooth_feat
        return up_feat
    if up_flag and (not smf_flag):
        if up_fea_in is not None:
            p_feat = upsample_add(up_fea_in, p_feat)
        return conv1x1(p_feat, p["w_up"], padding=1)
    if (not up_flag) and smf_flag:
        if up_fea_in is not None:
            p_feat = upsample_add(up_fea_in, p_feat)
        return conv3x3(p_feat, p["w_smooth"])


def fpn_output(p, x):
    x = conv3x3(x, p["w_conv"])
    return conv1x1(x, p["w_out"], out_dtype=jnp.float32)           # final logits in f32


def stub_backbone(p, x):
    # TODO(synk): resnet18 backbone source not provided; deterministic stub
    # (strided average pool + Pallas 1x1 projection) producing the 4 feature levels.
    feats = []
    for stride, name in ((4, "c4"), (8, "c8"), (16, "c16"), (32, "c32")):
        N, H, W, C = x.shape
        pooled = (x.reshape(N, H // stride, stride, W // stride, stride, C)
                  .astype(jnp.float32).mean(axis=(2, 4)).astype(jnp.bfloat16))
        feats.append(conv1x1(pooled, p[name]))
    return feats


# -----------------------------------------------------------------------------
# Parameter construction (deterministic, kaiming_normal_ a=1 like the module;
# weights are stored pre-transposed / pre-flattened in bf16 -> no per-step casts)
# -----------------------------------------------------------------------------


def _kaiming_mat(key, fan_in, shape):
    # kaiming_normal_(a=1) on the torch conv weight  =>  std = sqrt(1 / fan_in)
    return ((1.0 / fan_in) ** 0.5
            * jax.random.normal(key, shape, jnp.float32)).astype(jnp.bfloat16)


def make_fa_params(key, in_chan, out_chan):
    ks = jax.random.split(key, 5)
    mid = in_chan // 2
    return {
        "w_qk": _kaiming_mat(ks[0], in_chan, (in_chan, 2 * DQ)),    # fused [q | k]
        "w_v": _kaiming_mat(ks[1], in_chan, (in_chan, in_chan)),
        "w_lat": _kaiming_mat(ks[2], in_chan, (in_chan, in_chan)),
        "w_up": _kaiming_mat(ks[3], in_chan, (in_chan, mid)),
        "w_smooth": _kaiming_mat(ks[4], 9 * in_chan, (9 * in_chan, out_chan)),
    }


def make_fpn_params(key, in_chan, mid_chan, nclass):
    k0, k1 = jax.random.split(key)
    return {
        "w_conv": _kaiming_mat(k0, 9 * in_chan, (9 * in_chan, mid_chan)),
        "w_out": _kaiming_mat(k1, mid_chan, (mid_chan, nclass)),
    }


def make_params(key, ch, out_ch, nclass, ln_hw):
    keys = jax.random.split(key, 10)
    backbone1 = {
        "c4": _kaiming_mat(keys[0], 3, (3, ch[4])),
        "c8": _kaiming_mat(keys[1], 3, (3, ch[8])),
        "c16": _kaiming_mat(keys[2], 3, (3, ch[16])),
        "c32": _kaiming_mat(keys[3], 3, (3, ch[32])),
    }
    return {
        "backbone1": backbone1,
        "ffm_32_1": make_fa_params(keys[4], ch[32], out_ch),
        "ffm_16_1": make_fa_params(keys[5], ch[16], out_ch),
        "ffm_8_1": make_fa_params(keys[6], ch[8], out_ch),
        "ffm_4_1": make_fa_params(keys[7], ch[4], out_ch),
        "head1": make_fpn_params(keys[8], 2 * out_ch, 2 * out_ch, nclass),
        "ln1_w": jnp.ones(ln_hw, jnp.float32),
        "ln1_b": jnp.zeros(ln_hw, jnp.float32),
    }


# -----------------------------------------------------------------------------
# td2_fa forward (eval, pos_id=0 -> forward_path1)
# -----------------------------------------------------------------------------


def forward_path1(params, f_img):
    f2_img = f_img[1]
    _, _, h, w = f2_img.shape
    x = jnp.transpose(f2_img, (0, 2, 3, 1)).astype(jnp.bfloat16)   # one NCHW->NHWC + cast
    feat4, feat8, feat16, feat32 = stub_backbone(params["backbone1"], x)

    upfeat_32 = fa_module(params["ffm_32_1"], feat32, None, True, True)
    upfeat_16, smfeat_16 = fa_module(params["ffm_16_1"], feat16, upfeat_32, True, True)
    upfeat_8 = fa_module(params["ffm_8_1"], feat8, upfeat_16, True, False)
    smfeat_4 = fa_module(params["ffm_4_1"], feat4, upfeat_8, False, True)

    z1 = upsample_cat(smfeat_16, smfeat_4)

    # TODO(synk): Encoding/Attention (enc1/enc2/atn1) not in provided source; the
    # cross-path fusion is omitted and z1 goes through layer_norm1 + head1 directly.
    out1 = fpn_output(params["head1"],
                      layer_norm_hw(z1, params["ln1_w"], params["ln1_b"]))
    out1 = upsample_bilinear(out1, h, w)
    return jnp.transpose(out1, (0, 3, 1, 2))                       # NHWC -> NCHW boundary


def td2_fa_forward(params, f_img, pos_id=0):
    if pos_id == 0:
        return forward_path1(params, f_img)
    raise RuntimeError("Only path 0 implemented in this scaled-down script.")


# -----------------------------------------------------------------------------
# main
# -----------------------------------------------------------------------------

if __name__ == "__main__":
    NCLASS = 5
    OUT_CH = 32
    CH = {4: 16, 8: 32, 16: 64, 32: 128}
    N, H, W = 2, 64, 64
    LN_HW = (H // 4, W // 4)

    root = jax.random.PRNGKey(0)
    ks = jax.random.split(root, 16)

    # --- lightweight kernel correctness checks vs pure-JAX references ---
    # 1) streaming GEMM (1x1 convs)
    a_t = jax.random.normal(ks[2], (200, 72), jnp.float32)
    b_t = jax.random.normal(ks[3], (72, 136), jnp.float32)
    got = pallas_matmul(a_t, b_t, out_dtype=jnp.float32)
    ref = jnp.dot(a_t.astype(jnp.bfloat16).astype(jnp.float32),
                  b_t.astype(jnp.bfloat16).astype(jnp.float32))
    assert float(jnp.max(jnp.abs(got - ref))) < 2e-2 * (1.0 + float(jnp.max(jnp.abs(ref))))

    # 2) row-tiled 3x3 conv (H=16 -> 2 row tiles, exercises the cross-tile halo)
    xc = jax.random.normal(ks[4], (2, 16, 12, 16), jnp.float32).astype(jnp.bfloat16)
    wc = 0.1 * jax.random.normal(ks[5], (24, 16, 3, 3), jnp.float32)
    got = conv3x3(xc, conv3x3_weight(wc)).astype(jnp.float32)
    ref = jax.lax.conv_general_dilated(
        xc.astype(jnp.float32),
        jnp.transpose(wc, (2, 3, 1, 0)).astype(jnp.bfloat16).astype(jnp.float32),
        (1, 1), "SAME", dimension_numbers=("NHWC", "HWIO", "NHWC"))
    assert float(jnp.max(jnp.abs(got - ref))) < 5e-2 * (1.0 + float(jnp.max(jnp.abs(ref))))

    # 3) chunked FA attention (+ latlayer3 fold + residual); 4 HW chunks
    Na, HWa, Ca = 2, 256, 64
    q_t = jax.random.normal(ks[6], (Na, HWa, DQ), jnp.float32).astype(jnp.bfloat16)
    k_t = jax.random.normal(ks[7], (Na, HWa, DQ), jnp.float32).astype(jnp.bfloat16)
    v_t = jax.random.normal(ks[8], (Na, HWa, Ca), jnp.float32).astype(jnp.bfloat16)
    wl_t = (0.1 * jax.random.normal(ks[9], (Ca, Ca), jnp.float32)).astype(jnp.bfloat16)
    ft_t = jax.random.normal(ks[10], (Na, HWa, Ca), jnp.float32).astype(jnp.bfloat16)
    got = fa_attention(q_t, k_t, v_t, wl_t, ft_t, chunk_target=64).astype(jnp.float32)
    qf, kf = q_t.astype(jnp.float32), k_t.astype(jnp.float32)
    qn = qf / jnp.maximum(jnp.linalg.norm(qf, axis=-1, keepdims=True), 1e-12)
    kn = kf / jnp.maximum(jnp.linalg.norm(kf, axis=-1, keepdims=True), 1e-12)
    f_ref = jnp.einsum("ntd,ntc->ndc", kn, v_t.astype(jnp.float32))
    y_ref = jnp.einsum("ntd,ndc->ntc", qn, f_ref)
    ref = y_ref @ wl_t.astype(jnp.float32) + ft_t.astype(jnp.float32)
    assert float(jnp.max(jnp.abs(got - ref))) < 5e-2 * (1.0 + float(jnp.max(jnp.abs(ref))))

    # 4) chunked Layer_Norm over (H, W); 3 HW chunks
    xl = jax.random.normal(ks[11], (2, 8, 12, 24), jnp.float32).astype(jnp.bfloat16)
    wl_ = 1.0 + 0.1 * jax.random.normal(ks[12], (8, 12), jnp.float32)
    bl_ = 0.1 * jax.random.normal(ks[13], (8, 12), jnp.float32)
    got = layer_norm_hw(xl, wl_, bl_, chunk_target=32).astype(jnp.float32)
    xf32 = xl.astype(jnp.float32)
    mu = xf32.mean(axis=(1, 2), keepdims=True)
    var = ((xf32 - mu) ** 2).mean(axis=(1, 2), keepdims=True)
    ref = ((xf32 - mu) * jax.lax.rsqrt(var + 1e-5)
           * wl_[None, :, :, None] + bl_[None, :, :, None])
    assert float(jnp.max(jnp.abs(got - ref))) < 5e-2 * (1.0 + float(jnp.max(jnp.abs(ref))))

    # --- full forward (eval, pos_id=0) ---
    params = make_params(ks[0], CH, OUT_CH, NCLASS, LN_HW)
    f1_img = jax.random.normal(ks[14], (N, 3, H, W), jnp.float32)
    f2_img = jax.random.normal(ks[15], (N, 3, H, W), jnp.float32)

    fwd = jax.jit(lambda p, a, b: td2_fa_forward(p, (a, b), pos_id=0))
    out = jax.block_until_ready(fwd(params, f1_img, f2_img))

    assert out.shape == (N, NCLASS, H, W), out.shape
    assert bool(jnp.all(jnp.isfinite(out)))
    print("KERNEL_OK")
</pallas_src>

<mosaic_0001>
module attributes {stable_mosaic.version = 11 : i64} {
  func.func @_mm_kernel(%arg0: i32, %arg1: memref<200x72xbf16, #tpu.memory_space<vmem>>, %arg2: memref<72x136xbf16, #tpu.memory_space<vmem>>, %arg3: memref<200x136xf32, #tpu.memory_space<vmem>>) attributes {dimension_semantics = [#tpu.dimension_semantics<parallel>], iteration_bounds = array<i64: 1>, scalar_prefetch = 0 : i64, scratch_operands = 0 : i64, tpu.core_type = #tpu.core_type<tc>, window_params = [{transform_indices = @transform_0, window_bounds = array<i64: 200, 72>}, {pipeline_mode = #tpu.pipeline_mode<synchronous>, transform_indices = @transform_1, window_bounds = array<i64: 72, 136>}, {transform_indices = @transform_2, window_bounds = array<i64: 200, 136>}]} {
    %c0 = arith.constant 0 : index
    %c0_0 = arith.constant 0 : index
    %0 = vector.load %arg1[%c0, %c0_0] : memref<200x72xbf16, #tpu.memory_space<vmem>>, vector<200x72xbf16>
    %c0_1 = arith.constant 0 : index
    %c0_2 = arith.constant 0 : index
    %1 = vector.load %arg2[%c0_1, %c0_2] : memref<72x136xbf16, #tpu.memory_space<vmem>>, vector<72x136xbf16>
    %cst = arith.constant dense<0.000000e+00> : vector<200x136xf32>
    %2 = tpu.matmul %0, %1, %cst {dimension_numbers = #tpu.dot_dimension_numbers<[1], [0], [0], [1], [0, 0, 1, 1], [], []>} : vector<200x72xbf16>, vector<72x136xbf16>, vector<200x136xf32> -> vector<200x136xf32>
    %c0_3 = arith.constant 0 : index
    %c0_4 = arith.constant 0 : index
    %3 = vector.load %arg3[%c0_3, %c0_4] : memref<200x136xf32, #tpu.memory_space<vmem>>, vector<200x136xf32>
    tpu.vector_store %arg3[%c0_3, %c0_4], %2 {strides = array<i32>} : memref<200x136xf32, #tpu.memory_space<vmem>>, vector<200x136xf32>,
    return
  }
  func.func @transform_0(%arg0: i32) -> (i32, i32) {
    %c0_i32 = arith.constant 0 : i32
    %c0_i32_0 = arith.constant 0 : i32
    return %arg0, %c0_i32 : i32, i32
  }
  func.func @transform_1(%arg0: i32) -> (i32, i32) {
    %c0_i32 = arith.constant 0 : i32
    %c0_i32_0 = arith.constant 0 : i32
    %c0_i32_1 = arith.constant 0 : i32
    return %c0_i32, %c0_i32_0 : i32, i32
  }
  func.func @transform_2(%arg0: i32) -> (i32, i32) {
    %c0_i32 = arith.constant 0 : i32
    %c0_i32_0 = arith.constant 0 : i32
    return %arg0, %c0_i32 : i32, i32
  }
}

</mosaic_0001>

<llo_original>
// kernel: tpu_custom_call.1
$region0: #{tpu_custom_call.1}
  #allocation0 [shape = 'u32[]', space=smem, size = 0x4, offset = 0x4, fixed_abs, tag = 'smem constant byte address 0x4 - core index']
  #allocation1 [shape = 'u32[144,128]{1,0:T(1,128)}', space=vmem, size = 0x12000, scoped, tag = 'internal scratch']
  %s0 = inlined_call_operand.vmem [shape: bf16[200,72], index: 0, kind: input, shape index: {}]
  %s1 = inlined_call_operand.vmem [shape: bf16[72,136], index: 1, kind: input, shape index: {}]
  %s2 = inlined_call_operand.vmem [shape: f32[200,136], index: 2, kind: output, shape index: {}]
  %s3 = sld [smem:[#allocation0]]
  $region18: #{tpu_custom_call.1} parent=0
    _
  %s5 = ssub.s32 1, %s3
  %s6 = scalar_select 0, %s5, %s3
  // Predicated region
  $region2: #{tpu_custom_call.1} parent=0 // pred_check
    _
  $region3: #{tpu_custom_call.1} parent=0 // pred_check_branch
    %8 = sbr.rel (0) target = $region5
  $region4: #{tpu_custom_call.1} parent=0 // pred_region
    _
  $region5: #{tpu_custom_call.1} parent=0 // pred_fallthru
    _
  // Predicated region
  $region6: #{tpu_custom_call.1} parent=0 // pred_check
    _
  $region7: #{tpu_custom_call.1} parent=0 // pred_check_branch
    %10 = sbr.rel (0) target = $region9
  $region8: #{tpu_custom_call.1} parent=0 // pred_region
    _
  $region9: #{tpu_custom_call.1} parent=0 // pred_fallthru
    _
  %v12 = vld [vmem:[%s0] sm:$0xf]
  %v13 = vld [vmem:[%s0 + $0x4] sm:$0xf]
  %v14 = vld [vmem:[%s0 + $0x8] sm:$0xf]
  %v15 = vld [vmem:[%s0 + $0xc] sm:$0xf]
  %v16 = vld [vmem:[%s0 + $0x10] sm:$0xf]
  %v17 = vld [vmem:[%s0 + $0x14] sm:$0xf]
  %v18 = vld [vmem:[%s0 + $0x18] sm:$0xf]
  %v19 = vld [vmem:[%s0 + $0x1c] sm:$0xf]
  %v20 = vld [vmem:[%s0 + $0x20] sm:$0xf]
  %v21 = vld [vmem:[%s0 + $0x24] sm:$0xf]
  %v22 = vld [vmem:[%s0 + $0x28] sm:$0xf]
  %v23 = vld [vmem:[%s0 + $0x2c] sm:$0xf]
  %v24 = vld [vmem:[%s0 + $0x30] sm:$0xf]
  %v25 = vld [vmem:[%s0 + $0x34] sm:$0xf]
  %v26 = vld [vmem:[%s0 + $0x38] sm:$0xf]
  %v27 = vld [vmem:[%s0 + $0x3c] sm:$0xf]
  %v28 = vld [vmem:[%s0 + $0x40] sm:$0xf]
  %v29 = vld [vmem:[%s0 + $0x44] sm:$0xf]
  %v30 = vld [vmem:[%s0 + $0x48] sm:$0xf]
  %v31 = vld [vmem:[%s0 + $0x4c] sm:$0xf]
  %v32 = vld [vmem:[%s0 + $0x50] sm:$0xf]
  %v33 = vld [vmem:[%s0 + $0x54] sm:$0xf]
  %v34 = vld [vmem:[%s0 + $0x58] sm:$0xf]
  %v35 = vld [vmem:[%s0 + $0x5c] sm:$0xf]
  %v36 = vld [vmem:[%s0 + $0x60] sm:$0xf]
  %v37 = vld [vmem:[%s1] sm:$0xff]
  %v38 = vld [vmem:[%s1 + $0x8] sm:$0xff]
  %v39 = vld [vmem:[%s1 + $0x10] sm:$0xff]
  %v40 = vld [vmem:[%s1 + $0x18] sm:$0xff]
  %v41 = vld [vmem:[%s1 + $0x20] sm:$0xff]
  %v42 = vld [vmem:[%s1 + $0x28] sm:$0xff]
  %v43 = vld [vmem:[%s1 + $0x30] sm:$0xff]
  %v44 = vld [vmem:[%s1 + $0x38] sm:$0xff]
  %v45 = vld [vmem:[%s1 + $0x40] sm:$0xff]
  %v71 = vunpack.c.l.b16 %v12
  %v72 = vunpack.c.l.b16 %v13
  %v73 = vunpack.c.l.b16 %v14
  %v74 = vunpack.c.l.b16 %v15
  %v75 = vunpack.c.l.b16 %v16
  %v76 = vunpack.c.l.b16 %v17
  %v77 = vunpack.c.l.b16 %v18
  %v78 = vunpack.c.l.b16 %v19
  %v79 = vunpack.c.l.b16 %v20
  %v80 = vunpack.c.l.b16 %v21
  %v81 = vunpack.c.l.b16 %v22
  %v82 = vunpack.c.l.b16 %v23
  %v83 = vunpack.c.l.b16 %v24
  %v84 = vunpack.c.l.b16 %v25
  %v85 = vunpack.c.l.b16 %v26
  %v86 = vunpack.c.l.b16 %v27
  %v87 = vunpack.c.l.b16 %v28
  %v88 = vunpack.c.l.b16 %v29
  %v89 = vunpack.c.l.b16 %v30
  %v90 = vunpack.c.l.b16 %v31
  %v91 = vunpack.c.l.b16 %v32
  %v92 = vunpack.c.l.b16 %v33
  %v93 = vunpack.c.l.b16 %v34
  %v94 = vunpack.c.l.b16 %v35
  %v95 = vunpack.c.l.b16 %v36
  %v96 = vpack.c.b16 %v72, %v71
  %v97 = vpack.c.b16 %v74, %v73
  %v98 = vpack.c.b16 %v76, %v75
  %v99 = vpack.c.b16 %v78, %v77
  %v100 = vpack.c.b16 %v80, %v79
  %v101 = vpack.c.b16 %v82, %v81
  %v102 = vpack.c.b16 %v84, %v83
  %v103 = vpack.c.b16 %v86, %v85
  %v104 = vpack.c.b16 %v88, %v87
  %v105 = vpack.c.b16 %v90, %v89
  %v106 = vpack.c.b16 %v92, %v91
  %v107 = vpack.c.b16 %v94, %v93
  %v108 = vpack.c.b16 %v95, %v95
  %v118 = vunpack.c.l.b16 %v37
  %v119 = vunpack.c.h.b16 %v37
  %v120 = vunpack.c.l.b16 %v38
  %v121 = vunpack.c.h.b16 %v38
  %v122 = vunpack.c.l.b16 %v39
  %v123 = vunpack.c.h.b16 %v39
  %v124 = vunpack.c.l.b16 %v40
  %v125 = vunpack.c.h.b16 %v40
  %v126 = vunpack.c.l.b16 %v41
  %v127 = vunpack.c.h.b16 %v41
  %v128 = vunpack.c.l.b16 %v42
  %v129 = vunpack.c.h.b16 %v42
  %v130 = vunpack.c.l.b16 %v43
  %v131 = vunpack.c.h.b16 %v43
  %v132 = vunpack.c.l.b16 %v44
  %v133 = vunpack.c.h.b16 %v44
  %v134 = vunpack.c.l.b16 %v45
  %v135 = vunpack.c.h.b16 %v45
  %v136 = vpack.c.b16 %v120, %v118
  %v137 = vpack.c.b16 %v121, %v119
  %v138 = vpack.c.b16 %v124, %v122
  %v139 = vpack.c.b16 %v125, %v123
  %v140 = vpack.c.b16 %v128, %v126
  %v141 = vpack.c.b16 %v129, %v127
  %v142 = vpack.c.b16 %v132, %v130
  %v143 = vpack.c.b16 %v133, %v131
  %v144 = vpack.c.b16 %v134, %v134
  %v145 = vpack.c.b16 %v135, %v135
  %vm154 = vcmask 588800
  %v156 = vsel %vm154, %v96, 0
  %v159 = vsel %vm154, %v97, 0
  %v162 = vsel %vm154, %v98, 0
  %v165 = vsel %vm154, %v99, 0
  %v168 = vsel %vm154, %v100, 0
  %v171 = vsel %vm154, %v101, 0
  %v174 = vsel %vm154, %v102, 0
  %v177 = vsel %vm154, %v103, 0
  %v180 = vsel %vm154, %v104, 0
  %v183 = vsel %vm154, %v105, 0
  %v186 = vsel %vm154, %v106, 0
  %v189 = vsel %vm154, %v107, 0
  %v192 = vsel %vm154, %v108, 0
  %vm194 = vcmask 1043456
  %v196 = vsel %vm194, %v144, 0
  %v199 = vsel %vm194, %v145, 0
  %201 = vmatprep.subr.bf16.mxu0 0
  %202 = vmatpush1.bf16.msra.mxu0 0
  %203 = vmatprep.subr.bf16.mxu0 0
  %204 = vmatpush1.bf16.msra.mxu0 0
  %205 = vmatprep.subr.bf16.mxu0 0
  %206 = vmatpush1.bf16.msra.mxu0 0
  %207 = vmatprep.subr.bf16.mxu0 %v199
  %208 = vmatpush1.bf16.msra.mxu0 %v196
  %209 = vmatprep.subr.bf16.mxu0 %v143
  %210 = vmatpush1.bf16.msra.mxu0 %v142
  %211 = vmatprep.subr.bf16.mxu0 %v141
  %212 = vmatpush1.bf16.msra.mxu0 %v140
  %213 = vmatprep.subr.bf16.mxu0 %v139
  %214 = vmatpush1.bf16.msra.mxu0 %v138
  %215 = vmatprep.subr.bf16.mxu0 %v137
  %216 = vmatpush1.bf16.msra.mxu0 %v136
  %217 = vmatprep.subr.bf16.mxu0 0
  %218 = vmatpush2.bf16.msra.mxu0 0
  %219 = vmatprep.subr.bf16.mxu0 0
  %220 = vmatpush2.bf16.msra.mxu0 0
  %221 = vmatprep.subr.bf16.mxu0 0
  %222 = vmatpush2.bf16.msra.mxu0 0
  %223 = vmatprep.subr.bf16.mxu0 0
  %224 = vmatpush2.bf16.msra.mxu0 0
  %225 = vmatprep.subr.bf16.mxu0 0
  %226 = vmatpush2.bf16.msra.mxu0 0
  %227 = vmatprep.subr.bf16.mxu0 0
  %228 = vmatpush2.bf16.msra.mxu0 0
  %229 = vmatprep.subr.bf16.mxu0 0
  %230 = vmatpush2.bf16.msra.mxu0 0
  %231 = vmatprep.subr.bf16.mxu0 0
  %232 = vmatpush2.bf16.msra.mxu0 0
  %233 = vmatprep.mubr.bf16.mxu0 0
  %234 = vmatmul.mubr.bf16.gmra.mxu0 %v156
  %v235 = vpop.f32.mrf.mxu0
  %v236 = vadd.f32 0.0, %v235
  %v237 = vpop.f32.mrf.mxu0
  %v238 = vadd.f32 0.0, %v237
  %v239 = vpop.f32.mrf.mxu0
  %v240 = vadd.f32 0.0, %v239
  %v241 = vpop.f32.mrf.mxu0
  %v242 = vadd.f32 0.0, %v241
  %243 = vmatprep.mubr.bf16.mxu0 0
  %244 = vmatmul.mubr.bf16.gmra.mxu0 %v159
  %v245 = vpop.f32.mrf.mxu0
  %v246 = vadd.f32 0.0, %v245
  %v247 = vpop.f32.mrf.mxu0
  %v248 = vadd.f32 0.0, %v247
  %v249 = vpop.f32.mrf.mxu0
  %v250 = vadd.f32 0.0, %v249
  %v251 = vpop.f32.mrf.mxu0
  %v252 = vadd.f32 0.0, %v251
  %253 = vmatprep.mubr.bf16.mxu0 0
  %254 = vmatmul.mubr.bf16.gmra.mxu0 %v162
  %v255 = vpop.f32.mrf.mxu0
  %v256 = vadd.f32 0.0, %v255
  %v257 = vpop.f32.mrf.mxu0
  %v258 = vadd.f32 0.0, %v257
  %v259 = vpop.f32.mrf.mxu0
  %v260 = vadd.f32 0.0, %v259
  %v261 = vpop.f32.mrf.mxu0
  %v262 = vadd.f32 0.0, %v261
  %263 = vmatprep.mubr.bf16.mxu0 0
  %264 = vmatmul.mubr.bf16.gmra.mxu0 %v165
  %v265 = vpop.f32.mrf.mxu0
  %v266 = vadd.f32 0.0, %v265
  %v267 = vpop.f32.mrf.mxu0
  %v268 = vadd.f32 0.0, %v267
  %v269 = vpop.f32.mrf.mxu0
  %v270 = vadd.f32 0.0, %v269
  %v271 = vpop.f32.mrf.mxu0
  %v272 = vadd.f32 0.0, %v271
  %273 = vmatprep.mubr.bf16.mxu0 0
  %274 = vmatmul.mubr.bf16.gmra.mxu0 %v168
  %v275 = vpop.f32.mrf.mxu0
  %v276 = vadd.f32 0.0, %v275
  %v277 = vpop.f32.mrf.mxu0
  %v278 = vadd.f32 0.0, %v277
  %v279 = vpop.f32.mrf.mxu0
  %v280 = vadd.f32 0.0, %v279
  %v281 = vpop.f32.mrf.mxu0
  %v282 = vadd.f32 0.0, %v281
  %283 = vmatprep.mubr.bf16.mxu0 0
  %284 = vmatmul.mubr.bf16.gmra.mxu0 %v171
  %v285 = vpop.f32.mrf.mxu0
  %v286 = vadd.f32 0.0, %v285
  %v287 = vpop.f32.mrf.mxu0
  %v288 = vadd.f32 0.0, %v287
  %v289 = vpop.f32.mrf.mxu0
  %v290 = vadd.f32 0.0, %v289
  %v291 = vpop.f32.mrf.mxu0
  %v292 = vadd.f32 0.0, %v291
  %293 = vmatprep.mubr.bf16.mxu0 0
  %294 = vmatmul.mubr.bf16.gmra.mxu0 %v174
  %v295 = vpop.f32.mrf.mxu0
  %v296 = vadd.f32 0.0, %v295
  %v297 = vpop.f32.mrf.mxu0
  %v298 = vadd.f32 0.0, %v297
  %v299 = vpop.f32.mrf.mxu0
  %v300 = vadd.f32 0.0, %v299
  %v301 = vpop.f32.mrf.mxu0
  %v302 = vadd.f32 0.0, %v301
  %303 = vmatprep.mubr.bf16.mxu0 0
  %304 = vmatmul.mubr.bf16.gmra.mxu0 %v177
  %v305 = vpop.f32.mrf.mxu0
  %v306 = vadd.f32 0.0, %v305
  %v307 = vpop.f32.mrf.mxu0
  %v308 = vadd.f32 0.0, %v307
  %v309 = vpop.f32.mrf.mxu0
  %v310 = vadd.f32 0.0, %v309
  %v311 = vpop.f32.mrf.mxu0
  %v312 = vadd.f32 0.0, %v311
  %313 = vmatprep.mubr.bf16.mxu0 0
  %314 = vmatmul.mubr.bf16.gmra.mxu0 %v180
  %v315 = vpop.f32.mrf.mxu0
  %v316 = vadd.f32 0.0, %v315
  %v317 = vpop.f32.mrf.mxu0
  %v318 = vadd.f32 0.0, %v317
  %v319 = vpop.f32.mrf.mxu0
  %v320 = vadd.f32 0.0, %v319
  %v321 = vpop.f32.mrf.mxu0
  %v322 = vadd.f32 0.0, %v321
  %323 = vmatprep.mubr.bf16.mxu0 0
  %324 = vmatmul.mubr.bf16.gmra.mxu0 %v183
  %v325 = vpop.f32.mrf.mxu0
  %v326 = vadd.f32 0.0, %v325
  %v327 = vpop.f32.mrf.mxu0
  %v328 = vadd.f32 0.0, %v327
  %v329 = vpop.f32.mrf.mxu0
  %v330 = vadd.f32 0.0, %v329
  %v331 = vpop.f32.mrf.mxu0
  %v332 = vadd.f32 0.0, %v331
  %333 = vmatprep.mubr.bf16.mxu0 0
  %334 = vmatmul.mubr.bf16.gmra.mxu0 %v186
  %v335 = vpop.f32.mrf.mxu0
  %v336 = vadd.f32 0.0, %v335
  %v337 = vpop.f32.mrf.mxu0
  %v338 = vadd.f32 0.0, %v337
  %v339 = vpop.f32.mrf.mxu0
  %v340 = vadd.f32 0.0, %v339
  %v341 = vpop.f32.mrf.mxu0
  %v342 = vadd.f32 0.0, %v341
  %343 = vmatprep.mubr.bf16.mxu0 0
  %344 = vmatmul.mubr.bf16.gmra.mxu0 %v189
  %v345 = vpop.f32.mrf.mxu0
  %v346 = vadd.f32 0.0, %v345
  %v347 = vpop.f32.mrf.mxu0
  %v348 = vadd.f32 0.0, %v347
  %v349 = vpop.f32.mrf.mxu0
  %v350 = vadd.f32 0.0, %v349
  %v351 = vpop.f32.mrf.mxu0
  %v352 = vadd.f32 0.0, %v351
  %353 = vmatprep.mubr.bf16.mxu0 0
  %354 = vmatmul.mubr.bf16.gmra.mxu0 %v192
  %v355 = vpop.f32.mrf.mxu0
  %v356 = vadd.f32 0.0, %v355
  %v357 = vpop.f32.mrf.mxu0
  %v358 = vadd.f32 0.0, %v357
  %v359 = vpop.f32.mrf.mxu0
  %v360 = vpop.f32.mrf.mxu0
  %361 = vdwg.mxu0
  %362 = vst [vmem:[%s2] sm:$0xff] %v236
  %vm363 = vcmask 64512
  %364 = vst.msk [vmem:[%s2 + $0x8] sm:$0xff] %vm363, %v238
  %365 = vst [vmem:[%s2 + $0x10] sm:$0xff] %v240
  %366 = vst.msk [vmem:[%s2 + $0x18] sm:$0xff] %vm363, %v242
  %367 = vst [vmem:[%s2 + $0x20] sm:$0xff] %v246
  %368 = vst.msk [vmem:[%s2 + $0x28] sm:$0xff] %vm363, %v248
  %369 = vst [vmem:[%s2 + $0x30] sm:$0xff] %v250
  %370 = vst.msk [vmem:[%s2 + $0x38] sm:$0xff] %vm363, %v252
  %371 = vst [vmem:[%s2 + $0x40] sm:$0xff] %v256
  %372 = vst.msk [vmem:[%s2 + $0x48] sm:$0xff] %vm363, %v258
  %373 = vst [vmem:[%s2 + $0x50] sm:$0xff] %v260
  %374 = vst.msk [vmem:[%s2 + $0x58] sm:$0xff] %vm363, %v262
  %375 = vst [vmem:[%s2 + $0x60] sm:$0xff] %v266
  %376 = vst.msk [vmem:[%s2 + $0x68] sm:$0xff] %vm363, %v268
  %377 = vst [vmem:[%s2 + $0x70] sm:$0xff] %v270
  %378 = vst.msk [vmem:[%s2 + $0x78] sm:$0xff] %vm363, %v272
  %379 = vst [vmem:[%s2 + $0x80] sm:$0xff] %v276
  %380 = vst.msk [vmem:[%s2 + $0x88] sm:$0xff] %vm363, %v278
  %381 = vst [vmem:[%s2 + $0x90] sm:$0xff] %v280
  %382 = vst.msk [vmem:[%s2 + $0x98] sm:$0xff] %vm363, %v282
  %383 = vst [vmem:[%s2 + $0xa0] sm:$0xff] %v286
  %384 = vst.msk [vmem:[%s2 + $0xa8] sm:$0xff] %vm363, %v288
  %385 = vst [vmem:[%s2 + $0xb0] sm:$0xff] %v290
  %386 = vst.msk [vmem:[%s2 + $0xb8] sm:$0xff] %vm363, %v292
  %387 = vst [vmem:[%s2 + $0xc0] sm:$0xff] %v296
  %388 = vst.msk [vmem:[%s2 + $0xc8] sm:$0xff] %vm363, %v298
  %389 = vst [vmem:[%s2 + $0xd0] sm:$0xff] %v300
  %390 = vst.msk [vmem:[%s2 + $0xd8] sm:$0xff] %vm363, %v302
  %391 = vst [vmem:[%s2 + $0xe0] sm:$0xff] %v306
  %392 = vst.msk [vmem:[%s2 + $0xe8] sm:$0xff] %vm363, %v308
  %393 = vst [vmem:[%s2 + $0xf0] sm:$0xff] %v310
  %394 = vst.msk [vmem:[%s2 + $0xf8] sm:$0xff] %vm363, %v312
  %395 = vst [vmem:[%s2 + $0x100] sm:$0xff] %v316
  %396 = vst.msk [vmem:[%s2 + $0x108] sm:$0xff] %vm363, %v318
  %397 = vst [vmem:[%s2 + $0x110] sm:$0xff] %v320
  %398 = vst.msk [vmem:[%s2 + $0x118] sm:$0xff] %vm363, %v322
  %399 = vst [vmem:[%s2 + $0x120] sm:$0xff] %v326
  %400 = vst.msk [vmem:[%s2 + $0x128] sm:$0xff] %vm363, %v328
  %401 = vst [vmem:[%s2 + $0x130] sm:$0xff] %v330
  %402 = vst.msk [vmem:[%s2 + $0x138] sm:$0xff] %vm363, %v332
  %403 = vst [vmem:[%s2 + $0x140] sm:$0xff] %v336
  %404 = vst.msk [vmem:[%s2 + $0x148] sm:$0xff] %vm363, %v338
  %405 = vst [vmem:[%s2 + $0x150] sm:$0xff] %v340
  %406 = vst.msk [vmem:[%s2 + $0x158] sm:$0xff] %vm363, %v342
  %407 = vst [vmem:[%s2 + $0x160] sm:$0xff] %v346
  %408 = vst.msk [vmem:[%s2 + $0x168] sm:$0xff] %vm363, %v348
  %409 = vst [vmem:[%s2 + $0x170] sm:$0xff] %v350
  %410 = vst.msk [vmem:[%s2 + $0x178] sm:$0xff] %vm363, %v352
  %411 = vst [vmem:[%s2 + $0x180] sm:$0xff] %v356
  %412 = vst.msk [vmem:[%s2 + $0x188] sm:$0xff] %vm363, %v358
  // Predicated region
  $region10: #{tpu_custom_call.1} parent=0 // pred_check
    _
  $region11: #{tpu_custom_call.1} parent=0 // pred_check_branch
    %414 = sbr.rel (0) target = $region13
  $region12: #{tpu_custom_call.1} parent=0 // pred_region
    _
  $region13: #{tpu_custom_call.1} parent=0 // pred_fallthru
    _
  // Predicated region
  $region14: #{tpu_custom_call.1} parent=0 // pred_check
    _
  $region15: #{tpu_custom_call.1} parent=0 // pred_check_branch
    %416 = sbr.rel (0) target = $region17
  $region16: #{tpu_custom_call.1} parent=0 // pred_region
    _
  $region17: #{tpu_custom_call.1} parent=0 // pred_fallthru
    _

</llo_original>
